<compile_context>
chip_gen: v7x
topology: tpu7x:2x2x1
jax: 0.10.0
libtpu: 0.0.40
codegen_flags: <defaults>
</compile_context>

<pallas_src>
import jax
import jax.numpy as jnp
from jax.experimental import pallas as pl
from jax.experimental.pallas import tpu as pltpu


def _round_up(x, m):
    return (x + m - 1) // m * m


def _pad2d(x, rows, cols):
    return jnp.pad(x, ((0, rows - x.shape[0]), (0, cols - x.shape[1])))


# ----------------------------------------------------------------------------
# Kernel 1: term-scorer MLP  (Linear(2E->H) -> ReLU -> Linear(H->1) -> Sigmoid)
# grid = (N tiles,)  — each doc-term score is computed exactly once.
# ----------------------------------------------------------------------------
def _score_kernel(doc_ref, w1d_ref, b1_ref, w2r_ref, b2_ref, s_ref):
    # cat([term_embed, query_ctx]) @ W1 == term_embed @ W1[:E] + qctx @ W1[E:],
    # and the constant qctx @ W1[E:] term is folded into b1 on the host.
    h = (jnp.dot(doc_ref[...], w1d_ref[...], preferred_element_type=jnp.float32)
         + b1_ref[...])                                     # (TILE_N, H_pad) f32
    h = jnp.maximum(h, 0.0)                                 # ReLU (VPU, f32)
    # Linear(H -> 1) as a lane reduction: avoids a lane-width-1 MXU result tile.
    s = jnp.sum(h * w2r_ref[...], axis=1, keepdims=True) + b2_ref[...]
    s_ref[...] = jax.nn.sigmoid(s)                          # EUP, f32 scores


def term_scores(doc, w1d, b1_eff, w2r, b2, tile_n):
    n_pad, e_pad = doc.shape
    h_pad = w1d.shape[1]
    gn = n_pad // tile_n

    flops = int(2 * n_pad * e_pad * h_pad + 3 * n_pad * h_pad)
    bytes_accessed = int(doc.size * 2 + w1d.size * 2
                         + (b1_eff.size + w2r.size + b2.size) * 4 + n_pad * 4)

    # NOTE: score output is lane-width-1 (masked stores) but only N_pad*4 bytes
    # total, so it is negligible even at production N.
    return pl.pallas_call(
        _score_kernel,
        out_shape=jax.ShapeDtypeStruct((n_pad, 1), jnp.float32),
        grid_spec=pltpu.PrefetchScalarGridSpec(
            num_scalar_prefetch=0,
            grid=(gn,),
            in_specs=[
                pl.BlockSpec((tile_n, e_pad), lambda n: (n, 0)),   # doc embeds (bf16)
                pl.BlockSpec((e_pad, h_pad),  lambda n: (0, 0)),   # W1 doc half (bf16)
                pl.BlockSpec((1, h_pad),      lambda n: (0, 0)),   # b1 + qctx@W1q (f32)
                pl.BlockSpec((1, h_pad),      lambda n: (0, 0)),   # W2 as a row (f32)
                pl.BlockSpec((1, 1),          lambda n: (0, 0)),   # b2
            ],
            out_specs=pl.BlockSpec((tile_n, 1), lambda n: (n, 0)),
        ),
        compiler_params=pltpu.CompilerParams(
            dimension_semantics=("parallel",),
            vmem_limit_bytes=32 * 1024 * 1024),
        cost_estimate=pl.CostEstimate(flops=flops, transcendentals=int(n_pad),
                                      bytes_accessed=bytes_accessed),
    )(doc, w1d, b1_eff, w2r, b2)


# ----------------------------------------------------------------------------
# Kernel 2: scatter-add of per-term scores into vocab weights.
# grid = (V tiles [parallel], N tiles [arbitrary]); per-(v,n) hit counts are
# scalar-prefetched so empty vocab tiles skip the compare/select work.
# ----------------------------------------------------------------------------
def _scatter_kernel(counts_ref, scores_ref, ids_ref, out_ref):
    v = pl.program_id(0)
    n = pl.program_id(1)

    # Output block index (0, v) is constant across the inner n axis, so the
    # block stays VMEM-resident and is the accumulator directly (no scratch).
    @pl.when(n == 0)
    def _():
        out_ref[...] = jnp.zeros_like(out_ref)

    @pl.when(counts_ref[v * pl.num_programs(1) + n] > 0)
    def _():
        tile_n = ids_ref.shape[0]
        tile_v = out_ref.shape[1]
        # Padding rows carry id = -1 and never match a lane -> no mask tensor.
        lane = (jax.lax.broadcasted_iota(jnp.int32, (tile_n, tile_v), 1)
                + v * tile_v)
        hits = jnp.where(lane == ids_ref[...], scores_ref[...], 0.0)
        # Reduce over N on the XLU (sublane sum) instead of an M=1 f32 MXU dot.
        out_ref[...] += jnp.sum(hits, axis=0, keepdims=True)


def vocab_scatter(counts, scores, ids, v_pad, tile_n, tile_v):
    n_pad = scores.shape[0]
    gn = n_pad // tile_n
    gv = v_pad // tile_v

    flops = int(3 * n_pad * v_pad)                       # compare+select+add
    bytes_accessed = int(gv * n_pad * 8 + v_pad * 4 + counts.size * 4)

    return pl.pallas_call(
        _scatter_kernel,
        out_shape=jax.ShapeDtypeStruct((1, v_pad), jnp.float32),
        grid_spec=pltpu.PrefetchScalarGridSpec(
            num_scalar_prefetch=1,                        # counts -> SMEM
            grid=(gv, gn),
            in_specs=[
                pl.BlockSpec((tile_n, 1), lambda v, n, c: (n, 0)),   # scores
                pl.BlockSpec((tile_n, 1), lambda v, n, c: (n, 0)),   # token ids
            ],
            out_specs=pl.BlockSpec((1, tile_v), lambda v, n, c: (0, v)),
        ),
        compiler_params=pltpu.CompilerParams(
            dimension_semantics=("parallel", "arbitrary"),
            vmem_limit_bytes=32 * 1024 * 1024),
        cost_estimate=pl.CostEstimate(flops=flops, transcendentals=0,
                                      bytes_accessed=bytes_accessed),
    )(counts, scores, ids)


# ----------------------------------------------------------------------------
# Kernel 3: expansion generator MLP on cat([q, m, q*m]) — single 128-padded
# block (launch-overhead-bound; not worth a grid).  bf16 weights, f32 accum.
# ----------------------------------------------------------------------------
def _expand_kernel(qctx_ref, mexp_ref, wa_ref, wb_ref, wc_ref, b1_ref,
                   w2_ref, b2_ref, out_ref):
    q = qctx_ref[...]                     # (1, E_pad) f32
    m = mexp_ref[...]                     # (1, E_pad) f32
    qb = q.astype(jnp.bfloat16)
    mb = m.astype(jnp.bfloat16)
    qmb = (q * m).astype(jnp.bfloat16)
    # cat([q, m, q*m]) @ W1 == q @ W1[:E] + m @ W1[E:2E] + (q*m) @ W1[2E:]
    h = (jnp.dot(qb, wa_ref[...], preferred_element_type=jnp.float32)
         + jnp.dot(mb, wb_ref[...], preferred_element_type=jnp.float32)
         + jnp.dot(qmb, wc_ref[...], preferred_element_type=jnp.float32)
         + b1_ref[...])
    h = jnp.maximum(h, 0.0)
    out_ref[...] = (jnp.dot(h.astype(jnp.bfloat16), w2_ref[...],
                            preferred_element_type=jnp.float32)
                    + b2_ref[...])


def expansion_generate(qctx, exp_mean, wa, wb, wc, b1, w2, b2, e_pad):
    vmem = pl.BlockSpec(memory_space=pltpu.MemorySpace.VMEM)
    return pl.pallas_call(
        _expand_kernel,
        out_shape=jax.ShapeDtypeStruct((1, e_pad), jnp.float32),
        in_specs=[vmem] * 8,
        out_specs=vmem,
    )(qctx, exp_mean, wa, wb, wc, b1, w2, b2)


# ----------------------------------------------------------------------------
# Full forward (glue in plain JAX, hot path in Pallas)
# ----------------------------------------------------------------------------
def prf_query_expander_forward(params, query_terms, feedback_docs, n_terms,
                               tile_n=None, tile_v=None):
    emb = params["embedding"]                                 # (V, E) f32
    V, E = emb.shape

    E_pad = _round_up(E, 128)
    H_pad = _round_up(params["ts_b1"].shape[-1], 128)

    # query context = mean of query term embeddings
    qctx = jnp.mean(emb[query_terms], axis=0, keepdims=True)  # (1, E) f32

    # flatten all feedback-doc terms
    doc_ids = jnp.concatenate(feedback_docs, axis=0).astype(jnp.int32)   # (N,)
    N = doc_ids.shape[0]

    # Tiling.  tile_n: multiple of 16 (bf16 sublane packing); tile_v: multiple
    # of 128 lanes.  Per-generation guidance at production sizes:
    #   v5e/v6e (128 MiB VMEM): tile_n 512-1024, tile_v 2048-4096, and raise
    #     vmem_limit_bytes accordingly (v5e default scoped VMEM is only 16 MiB).
    #   v7x (64 MiB VMEM): keep tile_n <= 512, tile_v <= 2048, and keep gv even
    #     so the "parallel" V axis shards evenly across both TensorCores.
    if tile_n is None:
        tile_n = min(512, _round_up(N, 16))
    assert tile_n % 16 == 0
    N_pad = _round_up(N, tile_n)
    gn = N_pad // tile_n

    if tile_v is None:
        tile_v = min(2048, _round_up(V, 128))
    assert tile_v % 128 == 0
    V_pad = _round_up(V, tile_v)
    gv = V_pad // tile_v

    # TODO(synk): at production N*E, move this gather into the score kernel
    # (scalar-prefetch doc ids + double-buffered make_async_copy row gather from
    # the HBM embedding table) to remove the extra (N, E) f32 HBM round trip.
    doc_embeds = emb[doc_ids]                                 # (N, E) f32
    doc_p = _pad2d(doc_embeds, N_pad, E_pad).astype(jnp.bfloat16)

    # padding rows get id = -1 so they never hit any vocab lane (no mask tensor)
    ids_p = jnp.full((N_pad, 1), -1, jnp.int32).at[:N, 0].set(doc_ids)

    w1d = _pad2d(params["ts_w1d"], E_pad, H_pad).astype(jnp.bfloat16)
    # Fold the constant qctx @ W1q term into the bias in f32 on the host.
    b1_eff = _pad2d(params["ts_b1"] + qctx @ params["ts_w1q"], 1, H_pad)
    w2r = _pad2d(params["ts_w2"].T, 1, H_pad)                 # (1, H_pad) row
    b2 = params["ts_b2"]                                      # (1, 1)

    # Kernel 1: per-term sigmoid scores, computed once (hoisted out of V loop).
    scores = term_scores(doc_p, w1d, b1_eff, w2r, b2, tile_n) # (N_pad, 1) f32

    # Per-(v-tile, n-tile) hit histogram -> scalar prefetch so the scatter
    # kernel skips vocab tiles no doc term touches.
    counts = jnp.zeros((gv * gn,), jnp.int32).at[
        (doc_ids // tile_v) * gn + (jnp.arange(N) // tile_n)].add(1)

    # Kernel 2: scatter-add scores into vocab weights.
    vocab_weights = vocab_scatter(counts, scores, ids_p, V_pad, tile_n,
                                  tile_v)[0, :V]              # (V,)

    # top n_terms by accumulated score (== sorted(doc_weights) truncated, since
    # all appearing terms have positive score and n_terms <= #distinct terms)
    top_vals, top_idx = jax.lax.top_k(vocab_weights, n_terms)

    exp_mean = jnp.mean(emb[top_idx], axis=0, keepdims=True)  # (1, E)

    # Kernel 3: expansion generator MLP.
    expanded = expansion_generate(
        _pad2d(qctx, 1, E_pad), _pad2d(exp_mean, 1, E_pad),
        _pad2d(params["eg_wa"], E_pad, H_pad).astype(jnp.bfloat16),
        _pad2d(params["eg_wb"], E_pad, H_pad).astype(jnp.bfloat16),
        _pad2d(params["eg_wc"], E_pad, H_pad).astype(jnp.bfloat16),
        _pad2d(params["eg_b1"], 1, H_pad),
        _pad2d(params["eg_w2"], H_pad, E_pad).astype(jnp.bfloat16),
        _pad2d(params["eg_b2"], 1, E_pad),
        E_pad)[0, :E]                                         # (E,)

    return expanded, (top_idx, top_vals), vocab_weights, qctx[0]


# ----------------------------------------------------------------------------
# Pure-JAX reference (f32) for correctness check
# ----------------------------------------------------------------------------
def reference_forward(params, query_terms, feedback_docs, n_terms,
                      expansion_idx=None):
    emb = params["embedding"]
    V, E = emb.shape
    qctx = jnp.mean(emb[query_terms], axis=0)
    doc_ids = jnp.concatenate(feedback_docs, axis=0)
    d = emb[doc_ids]
    x = jnp.concatenate([d, jnp.broadcast_to(qctx, d.shape)], axis=1)
    w1 = jnp.concatenate([params["ts_w1d"], params["ts_w1q"]], axis=0)
    h = jax.nn.relu(x @ w1 + params["ts_b1"])
    s = jax.nn.sigmoid(h @ params["ts_w2"] + params["ts_b2"])[:, 0]
    weights = jnp.zeros((V,), jnp.float32).at[doc_ids].add(s)
    if expansion_idx is None:
        _, expansion_idx = jax.lax.top_k(weights, n_terms)
    exp_mean = jnp.mean(emb[expansion_idx], axis=0)
    z = jnp.concatenate([qctx, exp_mean, qctx * exp_mean])
    wg1 = jnp.concatenate([params["eg_wa"], params["eg_wb"], params["eg_wc"]], axis=0)
    hg = jax.nn.relu(z @ wg1 + params["eg_b1"][0])
    out = hg @ params["eg_w2"] + params["eg_b2"][0]
    return out, weights


# ----------------------------------------------------------------------------
# Deterministic parameter init (logical, unpadded shapes from module __init__)
# ----------------------------------------------------------------------------
def init_params(vocab_size, embedding_dim, hidden_dim):
    keys = jax.random.split(jax.random.PRNGKey(0), 8)
    s = 0.1
    return {
        "embedding": s * jax.random.normal(keys[0], (vocab_size, embedding_dim), jnp.float32),
        # term_scorer: Linear(2E -> H), Linear(H -> 1); W1 stored split as (E,H)+(E,H)
        "ts_w1d": s * jax.random.normal(keys[1], (embedding_dim, hidden_dim), jnp.float32),
        "ts_w1q": s * jax.random.normal(keys[2], (embedding_dim, hidden_dim), jnp.float32),
        "ts_b1": jnp.zeros((1, hidden_dim), jnp.float32),
        "ts_w2": s * jax.random.normal(keys[3], (hidden_dim, 1), jnp.float32),
        "ts_b2": jnp.zeros((1, 1), jnp.float32),
        # expansion_generator: Linear(3E -> H), Linear(H -> E); W1 split into three (E,H)
        "eg_wa": s * jax.random.normal(keys[4], (embedding_dim, hidden_dim), jnp.float32),
        "eg_wb": s * jax.random.normal(keys[5], (embedding_dim, hidden_dim), jnp.float32),
        "eg_wc": s * jax.random.normal(keys[6], (embedding_dim, hidden_dim), jnp.float32),
        "eg_b1": jnp.zeros((1, hidden_dim), jnp.float32),
        "eg_w2": s * jax.random.normal(keys[7], (hidden_dim, embedding_dim), jnp.float32),
        "eg_b2": jnp.zeros((1, embedding_dim), jnp.float32),
    }


if __name__ == "__main__":
    VOCAB, E, H = 1024, 32, 32
    N_TERMS = 8

    params = init_params(VOCAB, E, H)

    key = jax.random.PRNGKey(0)
    kq, kd = jax.random.split(key)
    query_terms = jax.random.randint(kq, (8,), 0, VOCAB, dtype=jnp.int32)
    doc_keys = jax.random.split(kd, 3)
    feedback_docs = [jax.random.randint(k, (40,), 0, VOCAB, dtype=jnp.int32)
                     for k in doc_keys]                       # N = 120 doc terms

    # tile_n=64 / tile_v=512 -> score grid (gn=2), scatter grid (gv=2, gn=2)
    expanded, (top_idx, top_vals), vocab_w, _ = prf_query_expander_forward(
        params, query_terms, feedback_docs, N_TERMS, tile_n=64, tile_v=512)
    jax.block_until_ready(expanded)

    # reference uses the kernel-selected expansion ids so the check is robust to
    # bf16-induced reordering of near-tied top-k scores
    ref_out, ref_w = reference_forward(params, query_terms, feedback_docs,
                                       N_TERMS, expansion_idx=top_idx)

    assert jnp.allclose(vocab_w, ref_w, atol=5e-3), "vocab weight mismatch"
    assert jnp.allclose(top_vals, ref_w[top_idx], atol=5e-3), "top-k value mismatch"
    assert jnp.allclose(expanded, ref_out, atol=5e-3), "expanded query mismatch"
    assert expanded.shape == (E,)
    assert top_idx.shape == (N_TERMS,)

    print("KERNEL_OK")
</pallas_src>

<mosaic_0001>
module attributes {stable_mosaic.version = 11 : i64} {
  func.func @_score_kernel(%arg0: i32, %arg1: memref<64x128xbf16, #tpu.memory_space<vmem>>, %arg2: memref<128x128xbf16, #tpu.memory_space<vmem>>, %arg3: memref<1x128xf32, #tpu.memory_space<vmem>>, %arg4: memref<1x128xf32, #tpu.memory_space<vmem>>, %arg5: memref<1x1xf32, #tpu.memory_space<vmem>>, %arg6: memref<64x1xf32, #tpu.memory_space<vmem>>) attributes {dimension_semantics = [#tpu.dimension_semantics<parallel>], iteration_bounds = array<i64: 2>, scalar_prefetch = 0 : i64, scratch_operands = 0 : i64, tpu.core_type = #tpu.core_type<tc>, window_params = [{transform_indices = @transform_0, window_bounds = array<i64: 64, 128>}, {pipeline_mode = #tpu.pipeline_mode<synchronous>, transform_indices = @transform_1, window_bounds = array<i64: 128, 128>}, {pipeline_mode = #tpu.pipeline_mode<synchronous>, transform_indices = @transform_2, window_bounds = array<i64: 1, 128>}, {pipeline_mode = #tpu.pipeline_mode<synchronous>, transform_indices = @transform_3, window_bounds = array<i64: 1, 128>}, {pipeline_mode = #tpu.pipeline_mode<synchronous>, transform_indices = @transform_4, window_bounds = array<i64: 1, 1>}, {transform_indices = @transform_5, window_bounds = array<i64: 64, 1>}]} {
    %c0 = arith.constant 0 : index
    %c0_0 = arith.constant 0 : index
    %0 = vector.load %arg1[%c0, %c0_0] : memref<64x128xbf16, #tpu.memory_space<vmem>>, vector<64x128xbf16>
    %c0_1 = arith.constant 0 : index
    %c0_2 = arith.constant 0 : index
    %1 = vector.load %arg2[%c0_1, %c0_2] : memref<128x128xbf16, #tpu.memory_space<vmem>>, vector<128x128xbf16>
    %cst = arith.constant dense<0.000000e+00> : vector<64x128xf32>
    %2 = tpu.matmul %0, %1, %cst {dimension_numbers = #tpu.dot_dimension_numbers<[1], [0], [0], [1], [0, 0, 1, 1], [], []>} : vector<64x128xbf16>, vector<128x128xbf16>, vector<64x128xf32> -> vector<64x128xf32>
    %c0_3 = arith.constant 0 : index
    %c0_4 = arith.constant 0 : index
    %3 = vector.load %arg3[%c0_3, %c0_4] : memref<1x128xf32, #tpu.memory_space<vmem>>, vector<1x128xf32>
    %4 = vector.broadcast %3 : vector<1x128xf32> to vector<64x128xf32>
    %5 = arith.addf %2, %4 : vector<64x128xf32>
    %cst_5 = arith.constant 0.000000e+00 : f32
    %6 = vector.broadcast %cst_5 : f32 to vector<64x128xf32>
    %7 = arith.maximumf %5, %6 : vector<64x128xf32>
    %c0_6 = arith.constant 0 : index
    %c0_7 = arith.constant 0 : index
    %8 = vector.load %arg4[%c0_6, %c0_7] : memref<1x128xf32, #tpu.memory_space<vmem>>, vector<1x128xf32>
    %9 = vector.broadcast %8 : vector<1x128xf32> to vector<64x128xf32>
    %10 = arith.mulf %7, %9 : vector<64x128xf32>
    %cst_8 = arith.constant dense<0.000000e+00> : vector<64xf32>
    %11 = vector.multi_reduction <add>, %10, %cst_8 [1] : vector<64x128xf32> to vector<64xf32>
    %12 = vector.shape_cast %11 : vector<64xf32> to vector<64x1xf32>
    %c0_9 = arith.constant 0 : index
    %c0_10 = arith.constant 0 : index
    %13 = vector.load %arg5[%c0_9, %c0_10] : memref<1x1xf32, #tpu.memory_space<vmem>>, vector<1x1xf32>
    %14 = vector.broadcast %13 : vector<1x1xf32> to vector<64x1xf32>
    %15 = arith.addf %12, %14 : vector<64x1xf32>
    %16 = arith.negf %15 : vector<64x1xf32>
    %17 = math.exp %16 : vector<64x1xf32>
    %cst_11 = arith.constant 1.000000e+00 : f32
    %18 = vector.broadcast %cst_11 : f32 to vector<64x1xf32>
    %19 = arith.addf %18, %17 : vector<64x1xf32>
    %20 = arith.divf %18, %19 : vector<64x1xf32>
    %c0_12 = arith.constant 0 : index
    %c0_13 = arith.constant 0 : index
    %21 = vector.load %arg6[%c0_12, %c0_13] : memref<64x1xf32, #tpu.memory_space<vmem>>, vector<64x1xf32>
    tpu.vector_store %arg6[%c0_12, %c0_13], %20 {strides = array<i32>} : memref<64x1xf32, #tpu.memory_space<vmem>>, vector<64x1xf32>,
    return
  }
  func.func @transform_0(%arg0: i32) -> (i32, i32) {
    %c0_i32 = arith.constant 0 : i32
    %c0_i32_0 = arith.constant 0 : i32
    return %arg0, %c0_i32 : i32, i32
  }
  func.func @transform_1(%arg0: i32) -> (i32, i32) {
    %c0_i32 = arith.constant 0 : i32
    %c0_i32_0 = arith.constant 0 : i32
    %c0_i32_1 = arith.constant 0 : i32
    return %c0_i32, %c0_i32_0 : i32, i32
  }
  func.func @transform_2(%arg0: i32) -> (i32, i32) {
    %c0_i32 = arith.constant 0 : i32
    %c0_i32_0 = arith.constant 0 : i32
    %c0_i32_1 = arith.constant 0 : i32
    return %c0_i32, %c0_i32_0 : i32, i32
  }
  func.func @transform_3(%arg0: i32) -> (i32, i32) {
    %c0_i32 = arith.constant 0 : i32
    %c0_i32_0 = arith.constant 0 : i32
    %c0_i32_1 = arith.constant 0 : i32
    return %c0_i32, %c0_i32_0 : i32, i32
  }
  func.func @transform_4(%arg0: i32) -> (i32, i32) {
    %c0_i32 = arith.constant 0 : i32
    %c0_i32_0 = arith.constant 0 : i32
    %c0_i32_1 = arith.constant 0 : i32
    return %c0_i32, %c0_i32_0 : i32, i32
  }
  func.func @transform_5(%arg0: i32) -> (i32, i32) {
    %c0_i32 = arith.constant 0 : i32
    %c0_i32_0 = arith.constant 0 : i32
    return %arg0, %c0_i32 : i32, i32
  }
}

</mosaic_0001>

<llo_original>
// kernel: tpu_custom_call.1
$region0: #{tpu_custom_call.1}
  #allocation0 [shape = 'u32[]', space=smem, size = 0x4, offset = 0x4, fixed_abs, tag = 'smem constant byte address 0x4 - core index']
  #allocation1 [shape = 'u32[144,128]{1,0:T(1,128)}', space=vmem, size = 0x12000, scoped, tag = 'internal scratch']
  #allocation2 [shape = 'f32[1,1]{1,0:T(1,128)S(1)}', space=vmem, size = 0x200, scoped, tag = 'scoped memory for tpu_custom_call.1']
  %s0 = inlined_call_operand.hbm [shape: bf16[128,128], index: 0, kind: input, shape index: {}]
  %s1 = inlined_call_operand.hbm [shape: bf16[128,128], index: 1, kind: input, shape index: {}]
  %s2 = inlined_call_operand.vmem [shape: f32[1,128], index: 2, kind: input, shape index: {}]
  %s3 = inlined_call_operand.vmem [shape: f32[1,128], index: 3, kind: input, shape index: {}]
  %s4 = inlined_call_operand.<no memory space> [shape: f32[1,1], index: 4, kind: input, shape index: {}]
  %s5 = inlined_call_operand.vmem [shape: f32[128,1], index: 5, kind: output, shape index: {}]
  %s6 = sld [smem:[#allocation0]]
  $region61: #{tpu_custom_call.1} parent=0
    _
  %s8 = ssub.s32 1, %s6
  %s9 = scalar_select 0, %s8, %s6
  %v10 = vstv %s4
  %11 = vst [vmem:[#allocation2] sm:$0x1] %v10
  $region1: #{tpu_custom_call.1} parent=0
    #allocation3 [shape = 'u8[32768]{0}', space=vmem, size = 0x8000, scoped, tag = 'input window, operand 0']
    #allocation4 [shape = 's32[2]{0}', space=sflag, size = 0x8, scoped, tag = 'scoped memory for tpu_custom_call.1']
    #allocation5 [shape = 'u8[32768]{0}', space=vmem, size = 0x8000, scoped, tag = 'input window, operand 1, single buffered']
    #allocation6 [shape = 's32[1]{0}', space=sflag, size = 0x4, scoped, tag = 'scoped memory for tpu_custom_call.1']
    %12 = vsyncpa [#allocation4], 0
    %s13 = scalar_lea.sflag [#allocation4], 1
    %14 = vsyncpa %s13, 0
    %15 = vsyncpa [#allocation6], 0
    loop: start=0, step=1, limit=4
    $region2: #{tpu_custom_call.1} parent=1 // loop_pre_header
      _
    $region3: #{tpu_custom_call.1} parent=1 // loop_header
      %s17 = sphi 0, %s21
      %p18 = scmp.ge.s32.totalorder %s17, 4
      %s27 = sphi 0, %s29
      %s30 = sphi 0, %s27
      %s31 = sphi 0, %s30
      %s47 = sphi 0, %s31
      %s51 = sphi 0, %s51
      %s53 = sphi 0, %s51
      %s54 = sphi 0, %s53
      %s68 = sphi 0, %s54
      %s72 = sphi 0, %s72
      %s74 = sphi 0, %s72
      %s75 = sphi 0, %s74
      %s89 = sphi 0, %s75
      %s93 = sphi 0, %s93
      %s95 = sphi 0, %s93
      %s96 = sphi 0, %s95
      %s110 = sphi 0, %s96
      %s114 = sphi 0, %s114
      %s116 = sphi 0, %s114
      %s117 = sphi 0, %s116
      %s131 = sphi 0, %s117
      %s137 = sphi 0, %s139
      %s140 = sphi 0, %s137
      %s141 = sphi 0, %s140
      %s157 = sphi 0, %s141
    $region4: #{tpu_custom_call.1} parent=1 // loop_header_branch
      %20 = sbr.rel (%p18) target = $region8
    $region5: #{tpu_custom_call.1} parent=1 // loop_body
      %s22 = ssub.s32 %s17, 1
      %s23 = ssub.s32 %s17, 2
      %s24 = sadd.s32 %s17, 1
      %s25 = ssub.s32 %s17, %s24
      %p26 = scmp.eq.s32.totalorder %s25, 0
      %s28 = sadd.s32 %s27, 1
      %s29 = scalar_select %p26, %s27, %s28
      %p32 = pneg %p26
      %p33 = scmp.eq.s32.totalorder %s17, 1
      %p34 = por %p32, %p33
      %p35 = scmp.ne.s32.totalorder %s27, %s30
      %p36 = scmp.eq.s32.totalorder %s17, 0
      %p37 = por %p35, %p36
      %p38 = scmp.ne.s32.totalorder %s27, %s30
      %p39 = scmp.eq.s32.totalorder %s22, 1
      %p40 = por %p38, %p39
      %p41 = scmp.ne.s32.totalorder %s30, %s31
      %p42 = scmp.eq.s32.totalorder %s22, 0
      %p43 = por %p41, %p42
      %p44 = scmp.ne.s32.totalorder %s30, %s31
      %p45 = scmp.eq.s32.totalorder %s23, 1
      %p46 = por %p44, %p45
      %p48 = scmp.ne.s32.totalorder %s31, %s47
      %p49 = scmp.eq.s32.totalorder %s23, 0
      %p50 = por %p48, %p49
      %s52 = sadd.s32 %s51, 1
      %p55 = scmp.eq.s32.totalorder %s17, 1
      %p56 = scmp.ne.s32.totalorder %s51, %s53
      %p57 = scmp.eq.s32.totalorder %s17, 0
      %p58 = por %p56, %p57
      %p59 = scmp.ne.s32.totalorder %s51, %s53
      %p60 = scmp.eq.s32.totalorder %s22, 1
      %p61 = por %p59, %p60
      %p62 = scmp.ne.s32.totalorder %s53, %s54
      %p63 = scmp.eq.s32.totalorder %s22, 0
      %p64 = por %p62, %p63
      %p65 = scmp.ne.s32.totalorder %s53, %s54
      %p66 = scmp.eq.s32.totalorder %s23, 1
      %p67 = por %p65, %p66
      %p69 = scmp.ne.s32.totalorder %s54, %s68
      %p70 = scmp.eq.s32.totalorder %s23, 0
      %p71 = por %p69, %p70
      %s73 = sadd.s32 %s72, 1
      %p76 = scmp.eq.s32.totalorder %s17, 1
      %p77 = scmp.ne.s32.totalorder %s72, %s74
      %p78 = scmp.eq.s32.totalorder %s17, 0
      %p79 = por %p77, %p78
      %p80 = scmp.ne.s32.totalorder %s72, %s74
      %p81 = scmp.eq.s32.totalorder %s22, 1
      %p82 = por %p80, %p81
      %p83 = scmp.ne.s32.totalorder %s74, %s75
      %p84 = scmp.eq.s32.totalorder %s22, 0
      %p85 = por %p83, %p84
      %p86 = scmp.ne.s32.totalorder %s74, %s75
      %p87 = scmp.eq.s32.totalorder %s23, 1
      %p88 = por %p86, %p87
      %p90 = scmp.ne.s32.totalorder %s75, %s89
      %p91 = scmp.eq.s32.totalorder %s23, 0
      %p92 = por %p90, %p91
      %s94 = sadd.s32 %s93, 1
      %p97 = scmp.eq.s32.totalorder %s17, 1
      %p98 = scmp.ne.s32.totalorder %s93, %s95
      %p99 = scmp.eq.s32.totalorder %s17, 0
      %p100 = por %p98, %p99
      %p101 = scmp.ne.s32.totalorder %s93, %s95
      %p102 = scmp.eq.s32.totalorder %s22, 1
      %p103 = por %p101, %p102
      %p104 = scmp.ne.s32.totalorder %s95, %s96
      %p105 = scmp.eq.s32.totalorder %s22, 0
      %p106 = por %p104, %p105
      %p107 = scmp.ne.s32.totalorder %s95, %s96
      %p108 = scmp.eq.s32.totalorder %s23, 1
      %p109 = por %p107, %p108
      %p111 = scmp.ne.s32.totalorder %s96, %s110
      %p112 = scmp.eq.s32.totalorder %s23, 0
      %p113 = por %p111, %p112
      %s115 = sadd.s32 %s114, 1
      %p118 = scmp.eq.s32.totalorder %s17, 1
      %p119 = scmp.ne.s32.totalorder %s114, %s116
      %p120 = scmp.eq.s32.totalorder %s17, 0
      %p121 = por %p119, %p120
      %p122 = scmp.ne.s32.totalorder %s114, %s116
      %p123 = scmp.eq.s32.totalorder %s22, 1
      %p124 = por %p122, %p123
      %p125 = scmp.ne.s32.totalorder %s116, %s117
      %p126 = scmp.eq.s32.totalorder %s22, 0
      %p127 = por %p125, %p126
      %p128 = scmp.ne.s32.totalorder %s116, %s117
      %p129 = scmp.eq.s32.totalorder %s23, 1
      %p130 = por %p128, %p129
      %p132 = scmp.ne.s32.totalorder %s117, %s131
      %p133 = scmp.eq.s32.totalorder %s23, 0
      %p134 = por %p132, %p133
      %s135 = ssub.s32 %s17, %s24
      %p136 = scmp.eq.s32.totalorder %s135, 0
      %s138 = sadd.s32 %s137, 1
      %s139 = scalar_select %p136, %s137, %s138
      %p142 = pneg %p136
      %p143 = scmp.eq.s32.totalorder %s17, 1
      %p144 = por %p142, %p143
      %p145 = scmp.ne.s32.totalorder %s137, %s140
      %p146 = scmp.eq.s32.totalorder %s17, 0
      %p147 = por %p145, %p146
      %p148 = scmp.ne.s32.totalorder %s137, %s140
      %p149 = scmp.eq.s32.totalorder %s22, 1
      %p150 = por %p148, %p149
      %p151 = scmp.ne.s32.totalorder %s140, %s141
      %p152 = scmp.eq.s32.totalorder %s22, 0
      %p153 = por %p151, %p152
      %p154 = scmp.ne.s32.totalorder %s140, %s141
      %p155 = scmp.eq.s32.totalorder %s23, 1
      %p156 = por %p154, %p155
      %p158 = scmp.ne.s32.totalorder %s141, %s157
      %p159 = scmp.eq.s32.totalorder %s23, 0
      %p160 = por %p158, %p159
      %p161 = scmp.le.s32.totalorder 1, %s17
      %p162 = scmp.lt.s32.totalorder %s17, 3
      %p163 = pnand %p161, %p162
      %p164 = pneg %p163
      // Predicated region
      $region9: #{tpu_custom_call.1} parent=5 // pred_check
        _
      $region10: #{tpu_custom_call.1} parent=5 // pred_check_branch
        %166 = sbr.rel (%p163) target = $region12
      $region11: #{tpu_custom_call.1} parent=5 // pred_region
        %s167 = ssub.s32 %s17, 1
        // Predicated region
        $region13: #{tpu_custom_call.1} parent=11 // pred_check
          %p168 = pneg %p64
        $region14: #{tpu_custom_call.1} parent=11 // pred_check_branch
          %170 = sbr.rel (%p168) target = $region16
        $region15: #{tpu_custom_call.1} parent=11 // pred_region
          %s172 = ssub.s32 1024, 1024
          %173 = vsyncadd [#allocation6], %s172
          %s174 = sshll.u32 [#allocation5], 4
          %s175 = int_to_ptr.vmem [resolvable:$true] %s174
          %180 = dma.hbm_to_vmem [thread:$0]  %s1, 1024, %s175, [#allocation6], 64, 64, 4
        $region16: #{tpu_custom_call.1} parent=11 // pred_fallthru
          _
        // Predicated region
        $region17: #{tpu_custom_call.1} parent=11 // pred_check
          %p181 = pneg %p85
        $region18: #{tpu_custom_call.1} parent=11 // pred_check_branch
          %183 = sbr.rel (%p181) target = $region20
        $region19: #{tpu_custom_call.1} parent=11 // pred_region
          _
        $region20: #{tpu_custom_call.1} parent=11 // pred_fallthru
          _
        // Predicated region
        $region21: #{tpu_custom_call.1} parent=11 // pred_check
          %p184 = pneg %p106
        $region22: #{tpu_custom_call.1} parent=11 // pred_check_branch
          %186 = sbr.rel (%p184) target = $region24
        $region23: #{tpu_custom_call.1} parent=11 // pred_region
          _
        $region24: #{tpu_custom_call.1} parent=11 // pred_fallthru
          _
        // Predicated region
        $region25: #{tpu_custom_call.1} parent=11 // pred_check
          %p187 = pneg %p127
        $region26: #{tpu_custom_call.1} parent=11 // pred_check_branch
          %189 = sbr.rel (%p187) target = $region28
        $region27: #{tpu_custom_call.1} parent=11 // pred_region
          _
        $region28: #{tpu_custom_call.1} parent=11 // pred_fallthru
          _
      $region12: #{tpu_custom_call.1} parent=5 // pred_fallthru
        _
      %p190 = scmp.lt.s32.totalorder %s17, 2
      // Predicated region
      $region29: #{tpu_custom_call.1} parent=5 // pred_check
        %p191 = pneg %p190
      $region30: #{tpu_custom_call.1} parent=5 // pred_check_branch
        %193 = sbr.rel (%p191) target = $region32
      $region31: #{tpu_custom_call.1} parent=5 // pred_region
        // Predicated region
        $region33: #{tpu_custom_call.1} parent=31 // pred_check
          %p194 = pneg %p37
        $region34: #{tpu_custom_call.1} parent=31 // pred_check_branch
          %196 = sbr.rel (%p194) target = $region36
        $region35: #{tpu_custom_call.1} parent=31 // pred_region
          %s197 = sand.u32 %s27, 1
          %s198 = scalar_lea.sflag [#allocation4], %s197
          %s199 = sand.u32 %s27, 1
          %s200 = smul.addr %s199, 32
          %s201 = scalar_lea.vmem [#allocation3], %s200
          %s202 = smul.u32 8, %s17
          %s204 = ssub.s32 512, 512
          %205 = vsyncadd %s198, %s204
          %s206 = smul.addr %s202, 64
          %s207 = scalar_lea.hbm %s0, %s206
          %s208 = sshll.u32 %s201, 4
          %s209 = int_to_ptr.vmem [resolvable:$true] %s208
          %214 = dma.hbm_to_vmem [thread:$0]  %s207, 512, %s209, %s198, 64, 64, 4
        $region36: #{tpu_custom_call.1} parent=31 // pred_fallthru
          _
      $region32: #{tpu_custom_call.1} parent=5 // pred_fallthru
        _
      %p215 = scmp.le.s32.totalorder 1, %s17
      %p216 = scmp.lt.s32.totalorder %s17, 3
      %p217 = pnand %p215, %p216
      %p218 = pneg %p217
      // Predicated region
      $region37: #{tpu_custom_call.1} parent=5 // pred_check
        _
      $region38: #{tpu_custom_call.1} parent=5 // pred_check_branch
        %220 = sbr.rel (%p217) target = $region40
      $region39: #{tpu_custom_call.1} parent=5 // pred_region
        %s221 = ssub.s32 %s17, 1
        %s222 = sand.u32 %s30, 1
        %s223 = scalar_lea.sflag [#allocation4], %s222
        %s224 = sand.u32 %s30, 1
        %s225 = smul.addr %s224, 32
        %s226 = scalar_lea.vmem [#allocation3], %s225
        // Predicated region
        $region41: #{tpu_custom_call.1} parent=39 // pred_check
          %p227 = pneg %p43
        $region42: #{tpu_custom_call.1} parent=39 // pred_check_branch
          %229 = sbr.rel (%p227) target = $region44
        $region43: #{tpu_custom_call.1} parent=39 // pred_region
          %230 = dma.done %s223, 512
        $region44: #{tpu_custom_call.1} parent=39 // pred_fallthru
          _
        // Predicated region
        $region45: #{tpu_custom_call.1} parent=39 // pred_check
          %p231 = pneg %p64
        $region46: #{tpu_custom_call.1} parent=39 // pred_check_branch
          %233 = sbr.rel (%p231) target = $region48
        $region47: #{tpu_custom_call.1} parent=39 // pred_region
          %234 = dma.done [#allocation6], 1024
        $region48: #{tpu_custom_call.1} parent=39 // pred_fallthru
          _
        %s235 = sand.u32 %s30, 1
        %s236 = scalar_lea.sflag [#allocation4], %s235
        %s237 = sand.u32 %s30, 1
        %s238 = smul.addr %s237, 32
        %s239 = scalar_lea.vmem [#allocation3], %s238
        %p240 = pneg %p43
        %p241 = pneg %p40
        %p242 = pneg %p64
        %p243 = pneg %p61
        %p244 = pneg %p85
        %p245 = pneg %p82
        %p246 = pneg %p106
        %p247 = pneg %p103
        %p248 = pneg %p127
        %p249 = pneg %p124
        %p250 = pneg %p153
        %p251 = pneg %p150
        %s252 = smul.u32 8, %s22
        %p253 = scmp.lt.s32.totalorder %s252, 15
        %s254 = scalar_select %p253, %s252, 15
        %s255 = smul.addr %s254, 8
        %s256 = scalar_lea.vmem %s5, %s255
        %s257 = smul.u32 8, %s22
        %s258 = smul.u32 8, %s22
        %p259 = scmp.lt.s32.totalorder %s258, 15
        %s260 = scalar_select %p259, %s258, 15
        %s261 = smul.addr %s260, 8
        %s262 = scalar_lea.vmem %s5, %s261
        %s263 = smul.u32 8, %s22
        %v265 = vld [vmem:[%s226] sm:$0xf]
        %v266 = vld [vmem:[%s226 + $0x4] sm:$0xf]
        %v267 = vld [vmem:[%s226 + $0x8] sm:$0xf]
        %v268 = vld [vmem:[%s226 + $0xc] sm:$0xf]
        %v269 = vld [vmem:[%s226 + $0x10] sm:$0xf]
        %v270 = vld [vmem:[%s226 + $0x14] sm:$0xf]
        %v271 = vld [vmem:[%s226 + $0x18] sm:$0xf]
        %v272 = vld [vmem:[%s226 + $0x1c] sm:$0xf]
        %v273 = vld [vmem:[#allocation5] sm:$0xf]
        %v274 = vld [vmem:[#allocation5 + $0x4] sm:$0xf]
        %v275 = vld [vmem:[#allocation5 + $0x8] sm:$0xf]
        %v276 = vld [vmem:[#allocation5 + $0xc] sm:$0xf]
        %v277 = vld [vmem:[#allocation5 + $0x10] sm:$0xf]
        %v278 = vld [vmem:[#allocation5 + $0x14] sm:$0xf]
        %v279 = vld [vmem:[#allocation5 + $0x18] sm:$0xf]
        %v280 = vld [vmem:[#allocation5 + $0x1c] sm:$0xf]
        %v281 = vld [vmem:[#allocation5 + $0x20] sm:$0xf]
        %v282 = vld [vmem:[#allocation5 + $0x24] sm:$0xf]
        %v283 = vld [vmem:[#allocation5 + $0x28] sm:$0xf]
        %v284 = vld [vmem:[#allocation5 + $0x2c] sm:$0xf]
        %v285 = vld [vmem:[#allocation5 + $0x30] sm:$0xf]
        %v286 = vld [vmem:[#allocation5 + $0x34] sm:$0xf]
        %v287 = vld [vmem:[#allocation5 + $0x38] sm:$0xf]
        %v288 = vld [vmem:[#allocation5 + $0x3c] sm:$0xf]
        %v289 = vld [vmem:[%s2] sm:$0x1]
        %v291 = vlaneseq
        %v292 = vshrl.u32 %v291, 7
        %v293 = vsub.s32 0, %v292
        %v294 = vrot.slane %v289, %v293
        %v304 = vunpack.c.l.b16 %v265
        %v305 = vunpack.c.l.b16 %v266
        %v306 = vunpack.c.l.b16 %v267
        %v307 = vunpack.c.l.b16 %v268
        %v308 = vunpack.c.l.b16 %v269
        %v309 = vunpack.c.l.b16 %v270
        %v310 = vunpack.c.l.b16 %v271
        %v311 = vunpack.c.l.b16 %v272
        %v312 = vpack.c.b16 %v305, %v304
        %v313 = vpack.c.b16 %v307, %v306
        %v314 = vpack.c.b16 %v309, %v308
        %v315 = vpack.c.b16 %v311, %v310
        %v336 = vunpack.c.l.b16 %v273
        %v337 = vunpack.c.l.b16 %v274
        %v338 = vunpack.c.l.b16 %v275
        %v339 = vunpack.c.l.b16 %v276
        %v340 = vunpack.c.l.b16 %v277
        %v341 = vunpack.c.l.b16 %v278
        %v342 = vunpack.c.l.b16 %v279
        %v343 = vunpack.c.l.b16 %v280
        %v344 = vunpack.c.l.b16 %v281
        %v345 = vunpack.c.l.b16 %v282
        %v346 = vunpack.c.l.b16 %v283
        %v347 = vunpack.c.l.b16 %v284
        %v348 = vunpack.c.l.b16 %v285
        %v349 = vunpack.c.l.b16 %v286
        %v350 = vunpack.c.l.b16 %v287
        %v351 = vunpack.c.l.b16 %v288
        %v352 = vpack.c.b16 %v337, %v336
        %v353 = vpack.c.b16 %v339, %v338
        %v354 = vpack.c.b16 %v341, %v340
        %v355 = vpack.c.b16 %v343, %v342
        %v356 = vpack.c.b16 %v345, %v344
        %v357 = vpack.c.b16 %v347, %v346
        %v358 = vpack.c.b16 %v349, %v348
        %v359 = vpack.c.b16 %v351, %v350
        %368 = vmatprep.subr.bf16.mxu0 0
        %369 = vmatpush1.bf16.msra.mxu0 %v352
        %370 = vmatprep.subr.bf16.mxu0 0
        %371 = vmatpush1.bf16.msra.mxu0 %v353
        %372 = vmatprep.subr.bf16.mxu0 0
        %373 = vmatpush1.bf16.msra.mxu0 %v354
        %374 = vmatprep.subr.bf16.mxu0 0
        %375 = vmatpush1.bf16.msra.mxu0 %v355
        %376 = vmatprep.subr.bf16.mxu0 0
        %377 = vmatpush1.bf16.msra.mxu0 %v356
        %378 = vmatprep.subr.bf16.mxu0 0
        %379 = vmatpush1.bf16.msra.mxu0 %v357
        %380 = vmatprep.subr.bf16.mxu0 0
        %381 = vmatpush1.bf16.msra.mxu0 %v358
        %382 = vmatprep.subr.bf16.mxu0 0
        %383 = vmatpush1.bf16.msra.mxu0 %v359
        %384 = vmatprep.subr.bf16.mxu0 0
        %385 = vmatpush1.bf16.msra.mxu0 0
        %386 = vmatprep.subr.bf16.mxu0 0
        %387 = vmatpush1.bf16.msra.mxu0 0
        %388 = vmatprep.subr.bf16.mxu0 0
        %389 = vmatpush1.bf16.msra.mxu0 0
        %390 = vmatprep.subr.bf16.mxu0 0
        %391 = vmatpush1.bf16.msra.mxu0 0
        %392 = vmatprep.subr.bf16.mxu0 0
        %393 = vmatpush1.bf16.msra.mxu0 0
        %394 = vmatprep.subr.bf16.mxu0 0
        %395 = vmatpush1.bf16.msra.mxu0 0
        %396 = vmatprep.subr.bf16.mxu0 0
        %397 = vmatpush1.bf16.msra.mxu0 0
        %398 = vmatprep.subr.bf16.mxu0 0
        %399 = vmatpush1.bf16.msra.mxu0 0
        %400 = vmatprep.mubr.bf16.mxu0 0
        %401 = vmatmul.mubr.bf16.gmra.mrb[0].mxu0 %v312
        %v402 = vpop.f32.mrb[0].mxu0
        %v403 = vadd.f32 %v294, %v402
        %v404 = vpop.f32.mrb[0].mxu0
        %v405 = vpop.f32.mrb[0].mxu0
        %v406 = vadd.f32 %v294, %v405
        %v407 = vpop.f32.mrb[0].mxu0
        %408 = vmatprep.mubr.bf16.mxu0 0
        %409 = vmatmul.mubr.bf16.gmra.mrb[0].mxu0 %v313
        %v410 = vpop.f32.mrb[0].mxu0
        %v411 = vadd.f32 %v294, %v410
        %v412 = vpop.f32.mrb[0].mxu0
        %v413 = vpop.f32.mrb[0].mxu0
        %v414 = vadd.f32 %v294, %v413
        %v415 = vpop.f32.mrb[0].mxu0
        %416 = vmatprep.mubr.bf16.mxu0 0
        %417 = vmatmul.mubr.bf16.gmra.mrb[0].mxu0 %v314
        %v418 = vpop.f32.mrb[0].mxu0
        %v419 = vadd.f32 %v294, %v418
        %v420 = vpop.f32.mrb[0].mxu0
        %v421 = vpop.f32.mrb[0].mxu0
        %v422 = vadd.f32 %v294, %v421
        %v423 = vpop.f32.mrb[0].mxu0
        %424 = vmatprep.mubr.bf16.mxu0 0
        %425 = vmatmul.mubr.bf16.gmra.mrb[0].mxu0 %v315
        %v426 = vpop.f32.mrb[0].mxu0
        %v427 = vadd.f32 %v294, %v426
        %v428 = vpop.f32.mrb[0].mxu0
        %v429 = vpop.f32.mrb[0].mxu0
        %v430 = vadd.f32 %v294, %v429
        %v431 = vpop.f32.mrb[0].mxu0
        %432 = vdwg.mxu0
        %v433 = vmax.f32 %v403, 0.0
        %v434 = vmax.f32 %v406, 0.0
        %v435 = vmax.f32 %v411, 0.0
        %v436 = vmax.f32 %v414, 0.0
        %v437 = vmax.f32 %v419, 0.0
        %v438 = vmax.f32 %v422, 0.0
        %v439 = vmax.f32 %v427, 0.0
        %v440 = vmax.f32 %v430, 0.0
        %v441 = vld [vmem:[%s3] sm:$0x1]
        %v443 = vlaneseq
        %v444 = vshrl.u32 %v443, 7
        %v445 = vsub.s32 0, %v444
        %v446 = vrot.slane %v441, %v445
        %v448 = vmul.f32 %v433, %v446
        %v449 = vmul.f32 %v434, %v446
        %v450 = vmul.f32 %v435, %v446
        %v451 = vmul.f32 %v436, %v446
        %v452 = vmul.f32 %v437, %v446
        %v453 = vmul.f32 %v438, %v446
        %v454 = vmul.f32 %v439, %v446
        %v455 = vmul.f32 %v440, %v446
        %456 = vadd.xlane.f32.xlu0 %v448
        %v457 = vpop.xlane.xlu0 %456
        %458 = vadd.xlane.f32.xlu0 %v449
        %v459 = vpop.xlane.xlu0 %458
        %460 = vadd.xlane.f32.xlu0 %v450
        %v461 = vpop.xlane.xlu0 %460
        %462 = vadd.xlane.f32.xlu0 %v451
        %v463 = vpop.xlane.xlu0 %462
        %464 = vadd.xlane.f32.xlu0 %v452
        %v465 = vpop.xlane.xlu0 %464
        %466 = vadd.xlane.f32.xlu0 %v453
        %v467 = vpop.xlane.xlu0 %466
        %468 = vadd.xlane.f32.xlu0 %v454
        %v469 = vpop.xlane.xlu0 %468
        %470 = vadd.xlane.f32.xlu0 %v455
        %v471 = vpop.xlane.xlu0 %470
        %v472 = vld [vmem:[#allocation2] sm:$0x1]
        %v474 = vlaneseq
        %v475 = vshrl.u32 %v474, 7
        %v476 = vsub.s32 0, %v475
        %v477 = vrot.slane %v472, %v476
        %v479 = vadd.f32 %v457, %v477
        %v480 = vadd.f32 %v459, %v477
        %v481 = vadd.f32 %v461, %v477
        %v482 = vadd.f32 %v463, %v477
        %v483 = vadd.f32 %v465, %v477
        %v484 = vadd.f32 %v467, %v477
        %v485 = vadd.f32 %v469, %v477
        %v486 = vadd.f32 %v471, %v477
        %v487 = vxor.u32 %v479, 2147483648
        %v488 = vxor.u32 %v480, 2147483648
        %v489 = vxor.u32 %v481, 2147483648
        %v490 = vxor.u32 %v482, 2147483648
        %v491 = vxor.u32 %v483, 2147483648
        %v492 = vxor.u32 %v484, 2147483648
        %v493 = vxor.u32 %v485, 2147483648
        %v494 = vxor.u32 %v486, 2147483648
        %v495 = vmul.f32 %v487, 1.442695
        %v496 = vpow.pop %v495
        %v497 = vmul.f32 %v488, 1.442695
        %v498 = vpow.pop %v497
        %v499 = vmul.f32 %v489, 1.442695
        %v500 = vpow.pop %v499
        %v501 = vmul.f32 %v490, 1.442695
        %v502 = vpow.pop %v501
        %v503 = vmul.f32 %v491, 1.442695
        %v504 = vpow.pop %v503
        %v505 = vmul.f32 %v492, 1.442695
        %v506 = vpow.pop %v505
        %v507 = vmul.f32 %v493, 1.442695
        %v508 = vpow.pop %v507
        %v509 = vmul.f32 %v494, 1.442695
        %v510 = vpow.pop %v509
        %v511 = vadd.f32 %v496, 1.0
        %v512 = vadd.f32 %v498, 1.0
        %v513 = vadd.f32 %v500, 1.0
        %v514 = vadd.f32 %v502, 1.0
        %v515 = vadd.f32 %v504, 1.0
        %v516 = vadd.f32 %v506, 1.0
        %v517 = vadd.f32 %v508, 1.0
        %v518 = vadd.f32 %v510, 1.0
        %v519 = vrcp.pop %v511
        %v520 = vmul.f32 1.0, %v519
        %v521 = vrcp.pop %v512
        %v522 = vmul.f32 1.0, %v521
        %v523 = vrcp.pop %v513
        %v524 = vmul.f32 1.0, %v523
        %v525 = vrcp.pop %v514
        %v526 = vmul.f32 1.0, %v525
        %v527 = vrcp.pop %v515
        %v528 = vmul.f32 1.0, %v527
        %v529 = vrcp.pop %v516
        %v530 = vmul.f32 1.0, %v529
        %v531 = vrcp.pop %v517
        %v532 = vmul.f32 1.0, %v531
        %v533 = vrcp.pop %v518
        %v534 = vmul.f32 1.0, %v533
        %vm535 = vcmask 7168
        %536 = vst.msk [vmem:[%s262] sm:$0xff] %vm535, %v520
        %537 = vst.msk [vmem:[%s262 + $0x8] sm:$0xff] %vm535, %v522
        %538 = vst.msk [vmem:[%s262 + $0x10] sm:$0xff] %vm535, %v524
        %539 = vst.msk [vmem:[%s262 + $0x18] sm:$0xff] %vm535, %v526
        %540 = vst.msk [vmem:[%s262 + $0x20] sm:$0xff] %vm535, %v528
        %541 = vst.msk [vmem:[%s262 + $0x28] sm:$0xff] %vm535, %v530
        %542 = vst.msk [vmem:[%s262 + $0x30] sm:$0xff] %vm535, %v532
        %543 = vst.msk [vmem:[%s262 + $0x38] sm:$0xff] %vm535, %v534
        %s544 = smul.u32 8, %s22
        %p545 = scmp.lt.s32.totalorder %s544, 15
        %s546 = scalar_select %p545, %s544, 15
        %s547 = smul.addr %s546, 8
        %s548 = scalar_lea.vmem %s5, %s547
        // Predicated region
        $region49: #{tpu_custom_call.1} parent=39 // pred_check
          %p549 = pneg %p150
        $region50: #{tpu_custom_call.1} parent=39 // pred_check_branch
          %551 = sbr.rel (%p549) target = $region52
        $region51: #{tpu_custom_call.1} parent=39 // pred_region
          %s552 = smul.u32 8, %s22
        $region52: #{tpu_custom_call.1} parent=39 // pred_fallthru
          _
      $region40: #{tpu_custom_call.1} parent=5 // pred_fallthru
        _
      %p553 = scmp.le.s32.totalorder 2, %s17
      // Predicated region
      $region53: #{tpu_custom_call.1} parent=5 // pred_check
        %p554 = pneg %p553
      $region54: #{tpu_custom_call.1} parent=5 // pred_check_branch
        %556 = sbr.rel (%p554) target = $region56
      $region55: #{tpu_custom_call.1} parent=5 // pred_region
        %s557 = ssub.s32 %s17, 2
        // Predicated region
        $region57: #{tpu_custom_call.1} parent=55 // pred_check
          %p558 = pneg %p156
        $region58: #{tpu_custom_call.1} parent=55 // pred_check_branch
          %560 = sbr.rel (%p558) target = $region60
        $region59: #{tpu_custom_call.1} parent=55 // pred_region
          %s561 = smul.u32 8, %s23
          %p562 = scmp.lt.s32.totalorder %s561, 15
          %s563 = scalar_select %p562, %s561, 15
          %s564 = smul.addr %s563, 8
          %s565 = scalar_lea.vmem %s5, %s564
        $region60: #{tpu_custom_call.1} parent=55 // pred_fallthru
          _
      $region56: #{tpu_custom_call.1} parent=5 // pred_fallthru
        _
    $region6: #{tpu_custom_call.1} parent=1 // loop_footer
      %s21 = sadd.s32 1, %s17
    $region7: #{tpu_custom_call.1} parent=1 // loop_footer_branch
      %16 = sbr.rel target = $region3
    $region8: #{tpu_custom_call.1} parent=1 // loop_exit
      _
    %566 = vsyncpa [#allocation4], 1
    %s567 = scalar_lea.sflag [#allocation4], 1
    %568 = vsyncpa %s567, 1
    %569 = vsyncpa [#allocation6], 1

</llo_original>
